<compile_context>
chip_gen: v7x
topology: tpu7x:2x2x1
jax: 0.10.0
libtpu: 0.0.40
codegen_flags: <defaults>
</compile_context>

<pallas_src>
import functools

import jax
import jax.numpy as jnp
from jax.experimental import pallas as pl
from jax.experimental.pallas import tpu as pltpu


def _round_up(x, m):
    return ((x + m - 1) // m) * m


def _mlp_kernel(x_ref, *refs, n_layers):
    """Fused MLP. refs = (w0, b0, w1, b1, ..., o_ref); weights bf16, biases f32."""
    o_ref = refs[-1]
    wb = refs[:-1]
    h = x_ref[...]
    for i in range(n_layers):
        w = wb[2 * i][...]               # (in, out) bf16 -> MXU-native operand
        b = wb[2 * i + 1][...]           # (1, out) f32; broadcasts along sublanes
        h = jnp.dot(h.astype(jnp.bfloat16), w,
                    preferred_element_type=jnp.float32) + b
        if i != n_layers - 1:
            h = jnp.maximum(h, 0.0)
    o_ref[...] = h.astype(o_ref.dtype)


def bushfire_forward(x, params, *, tile_b=2048):
    """Pallas equivalent of BushfireModel.forward (Linear -> ReLU ... -> Linear).

    params: list of (w, b) with w shaped (in, out) (transpose of nn.Linear) and
    b shaped (1, out). Weights are cast to bf16 for the MXU; accumulation f32.
    """
    B, n = x.shape
    n_layers = len(params)
    out_dim = params[-1][0].shape[1]

    # Batch tile: large (amortize per-step overhead), multiple of 8 sublanes,
    # but clamped so there are >= 2 grid steps when B allows it (v7x megacore).
    tile = min(tile_b, max(8, _round_up(pl.cdiv(B, 2), 8)))
    num_tiles = pl.cdiv(B, tile)   # partial last block handled by Pallas clamping

    flat_params = []
    wb_specs = []
    for w, b in params:
        flat_params.append(w.astype(jnp.bfloat16))   # no-op if stored bf16 at init
        flat_params.append(b.astype(jnp.float32))
        # Full-shape blocks with a constant index_map: fetched once, resident
        # in VMEM across all grid steps.
        wb_specs.append(pl.BlockSpec(tuple(w.shape), lambda i: (0, 0)))
        wb_specs.append(pl.BlockSpec(tuple(b.shape), lambda i: (0, 0)))

    kernel = functools.partial(_mlp_kernel, n_layers=n_layers)
    return pl.pallas_call(
        kernel,
        out_shape=jax.ShapeDtypeStruct((B, out_dim), x.dtype),
        grid=(num_tiles,),
        in_specs=[pl.BlockSpec((tile, n), lambda i: (i, 0))] + wb_specs,
        out_specs=pl.BlockSpec((tile, out_dim), lambda i: (i, 0)),
        compiler_params=pltpu.CompilerParams(
            dimension_semantics=("parallel",),
            vmem_limit_bytes=32 * 1024 * 1024),
    )(x, *flat_params)


def bushfire_forward_ref(x, params):
    """Pure-JAX reference mirroring the kernel's bf16-matmul / f32-accumulate math."""
    n_layers = len(params)
    h = x
    for i, (w, b) in enumerate(params):
        h = jnp.dot(h.astype(jnp.bfloat16), w.astype(jnp.bfloat16),
                    preferred_element_type=jnp.float32) + b.astype(jnp.float32)
        if i != n_layers - 1:
            h = jnp.maximum(h, 0.0)
    return h


def init_params(key, n, hidden_layers):
    """Deterministic init mirroring nn.Linear's U(-1/sqrt(fan_in), 1/sqrt(fan_in)).

    Weights stored as (in, out) = transpose of PyTorch's (out, in) layout.
    """
    dims_in = [n, *hidden_layers]
    dims_out = [*hidden_layers, 1]
    params = []
    for d_in, d_out in zip(dims_in, dims_out):
        key, kw, kb = jax.random.split(key, 3)
        bound = 1.0 / float(jnp.sqrt(jnp.float32(d_in)))
        w = jax.random.uniform(kw, (d_in, d_out), jnp.float32, -bound, bound)
        b = jax.random.uniform(kb, (1, d_out), jnp.float32, -bound, bound)
        params.append((w, b))
    return params


def prepare_params(params):
    """One-time conversion of weights to bf16 (MXU-native); biases stay f32."""
    return [(w.astype(jnp.bfloat16), b.astype(jnp.float32)) for w, b in params]


if __name__ == "__main__":
    key = jax.random.PRNGKey(0)
    n = 32                      # input feature dim
    hidden_layers = [64, 32]    # hidden layer sizes

    key, kx, kp, kx2, kx3 = jax.random.split(key, 5)
    params_f32 = init_params(kp, n, hidden_layers)
    params = prepare_params(params_f32)      # bf16 weights, converted once

    tol = dict(atol=2e-3, rtol=2e-3)          # bf16 matmul operands

    # Small single-tile case.
    x = jax.random.normal(kx, (8, n), jnp.float32)
    out = jax.block_until_ready(bushfire_forward(x, params))
    assert out.shape == (8, 1), out.shape
    ref = bushfire_forward_ref(x, params_f32)
    assert jnp.allclose(out, ref, **tol), "mismatch vs reference (small)"

    # Non-divisible batch: exercises 2 'parallel' grid tiles + partial edge block
    # (no wrapper-side jnp.pad anymore).
    xb = jax.random.normal(kx2, (300, n), jnp.float32)
    outb = jax.block_until_ready(bushfire_forward(xb, params))
    assert outb.shape == (300, 1), outb.shape
    refb = bushfire_forward_ref(xb, params_f32)
    assert jnp.allclose(outb, refb, **tol), "mismatch vs reference (batched)"

    # Larger batch: exercises the default 2048-row tile with a partial last block.
    xl = jax.random.normal(kx3, (5000, n), jnp.float32)
    outl = jax.block_until_ready(bushfire_forward(xl, params))
    assert outl.shape == (5000, 1), outl.shape
    refl = bushfire_forward_ref(xl, params_f32)
    assert jnp.allclose(outl, refl, **tol), "mismatch vs reference (large)"

    print("KERNEL_OK")
</pallas_src>

<mosaic_0001>
module attributes {stable_mosaic.version = 11 : i64} {
  func.func @_mlp_kernel(%arg0: i32, %arg1: memref<8x32xf32, #tpu.memory_space<vmem>>, %arg2: memref<32x64xbf16, #tpu.memory_space<vmem>>, %arg3: memref<1x64xf32, #tpu.memory_space<vmem>>, %arg4: memref<64x32xbf16, #tpu.memory_space<vmem>>, %arg5: memref<1x32xf32, #tpu.memory_space<vmem>>, %arg6: memref<32x1xbf16, #tpu.memory_space<vmem>>, %arg7: memref<1x1xf32, #tpu.memory_space<vmem>>, %arg8: memref<8x1xf32, #tpu.memory_space<vmem>>) attributes {dimension_semantics = [#tpu.dimension_semantics<parallel>], iteration_bounds = array<i64: 1>, scalar_prefetch = 0 : i64, scratch_operands = 0 : i64, tpu.core_type = #tpu.core_type<tc>, window_params = [{transform_indices = @transform_0, window_bounds = array<i64: 8, 32>}, {pipeline_mode = #tpu.pipeline_mode<synchronous>, transform_indices = @transform_1, window_bounds = array<i64: 32, 64>}, {pipeline_mode = #tpu.pipeline_mode<synchronous>, transform_indices = @transform_2, window_bounds = array<i64: 1, 64>}, {pipeline_mode = #tpu.pipeline_mode<synchronous>, transform_indices = @transform_3, window_bounds = array<i64: 64, 32>}, {pipeline_mode = #tpu.pipeline_mode<synchronous>, transform_indices = @transform_4, window_bounds = array<i64: 1, 32>}, {pipeline_mode = #tpu.pipeline_mode<synchronous>, transform_indices = @transform_5, window_bounds = array<i64: 32, 1>}, {pipeline_mode = #tpu.pipeline_mode<synchronous>, transform_indices = @transform_6, window_bounds = array<i64: 1, 1>}, {transform_indices = @transform_7, window_bounds = array<i64: 8, 1>}]} {
    %c0 = arith.constant 0 : index
    %c0_0 = arith.constant 0 : index
    %0 = vector.load %arg1[%c0, %c0_0] : memref<8x32xf32, #tpu.memory_space<vmem>>, vector<8x32xf32>
    %c0_1 = arith.constant 0 : index
    %c0_2 = arith.constant 0 : index
    %1 = vector.load %arg2[%c0_1, %c0_2] : memref<32x64xbf16, #tpu.memory_space<vmem>>, vector<32x64xbf16>
    %c0_3 = arith.constant 0 : index
    %c0_4 = arith.constant 0 : index
    %2 = vector.load %arg3[%c0_3, %c0_4] : memref<1x64xf32, #tpu.memory_space<vmem>>, vector<1x64xf32>
    %3 = arith.truncf %0 : vector<8x32xf32> to vector<8x32xbf16>
    %cst = arith.constant dense<0.000000e+00> : vector<8x64xf32>
    %4 = tpu.matmul %3, %1, %cst {dimension_numbers = #tpu.dot_dimension_numbers<[1], [0], [0], [1], [0, 0, 1, 1], [], []>} : vector<8x32xbf16>, vector<32x64xbf16>, vector<8x64xf32> -> vector<8x64xf32>
    %5 = vector.broadcast %2 : vector<1x64xf32> to vector<8x64xf32>
    %6 = arith.addf %4, %5 : vector<8x64xf32>
    %cst_5 = arith.constant 0.000000e+00 : f32
    %7 = vector.broadcast %cst_5 : f32 to vector<8x64xf32>
    %8 = arith.maximumf %6, %7 : vector<8x64xf32>
    %c0_6 = arith.constant 0 : index
    %c0_7 = arith.constant 0 : index
    %9 = vector.load %arg4[%c0_6, %c0_7] : memref<64x32xbf16, #tpu.memory_space<vmem>>, vector<64x32xbf16>
    %c0_8 = arith.constant 0 : index
    %c0_9 = arith.constant 0 : index
    %10 = vector.load %arg5[%c0_8, %c0_9] : memref<1x32xf32, #tpu.memory_space<vmem>>, vector<1x32xf32>
    %11 = arith.truncf %8 : vector<8x64xf32> to vector<8x64xbf16>
    %cst_10 = arith.constant dense<0.000000e+00> : vector<8x32xf32>
    %12 = tpu.matmul %11, %9, %cst_10 {dimension_numbers = #tpu.dot_dimension_numbers<[1], [0], [0], [1], [0, 0, 1, 1], [], []>} : vector<8x64xbf16>, vector<64x32xbf16>, vector<8x32xf32> -> vector<8x32xf32>
    %13 = vector.broadcast %10 : vector<1x32xf32> to vector<8x32xf32>
    %14 = arith.addf %12, %13 : vector<8x32xf32>
    %cst_11 = arith.constant 0.000000e+00 : f32
    %15 = vector.broadcast %cst_11 : f32 to vector<8x32xf32>
    %16 = arith.maximumf %14, %15 : vector<8x32xf32>
    %c0_12 = arith.constant 0 : index
    %c0_13 = arith.constant 0 : index
    %17 = vector.load %arg6[%c0_12, %c0_13] : memref<32x1xbf16, #tpu.memory_space<vmem>>, vector<32x1xbf16>
    %c0_14 = arith.constant 0 : index
    %c0_15 = arith.constant 0 : index
    %18 = vector.load %arg7[%c0_14, %c0_15] : memref<1x1xf32, #tpu.memory_space<vmem>>, vector<1x1xf32>
    %19 = arith.truncf %16 : vector<8x32xf32> to vector<8x32xbf16>
    %cst_16 = arith.constant dense<0.000000e+00> : vector<8x1xf32>
    %20 = tpu.matmul %19, %17, %cst_16 {dimension_numbers = #tpu.dot_dimension_numbers<[1], [0], [0], [1], [0, 0, 1, 1], [], []>} : vector<8x32xbf16>, vector<32x1xbf16>, vector<8x1xf32> -> vector<8x1xf32>
    %21 = vector.broadcast %18 : vector<1x1xf32> to vector<8x1xf32>
    %22 = arith.addf %20, %21 : vector<8x1xf32>
    %c0_17 = arith.constant 0 : index
    %c0_18 = arith.constant 0 : index
    %23 = vector.load %arg8[%c0_17, %c0_18] : memref<8x1xf32, #tpu.memory_space<vmem>>, vector<8x1xf32>
    tpu.vector_store %arg8[%c0_17, %c0_18], %22 {strides = array<i32>} : memref<8x1xf32, #tpu.memory_space<vmem>>, vector<8x1xf32>,
    return
  }
  func.func @transform_0(%arg0: i32) -> (i32, i32) {
    %c0_i32 = arith.constant 0 : i32
    %c0_i32_0 = arith.constant 0 : i32
    return %arg0, %c0_i32 : i32, i32
  }
  func.func @transform_1(%arg0: i32) -> (i32, i32) {
    %c0_i32 = arith.constant 0 : i32
    %c0_i32_0 = arith.constant 0 : i32
    %c0_i32_1 = arith.constant 0 : i32
    return %c0_i32, %c0_i32_0 : i32, i32
  }
  func.func @transform_2(%arg0: i32) -> (i32, i32) {
    %c0_i32 = arith.constant 0 : i32
    %c0_i32_0 = arith.constant 0 : i32
    %c0_i32_1 = arith.constant 0 : i32
    return %c0_i32, %c0_i32_0 : i32, i32
  }
  func.func @transform_3(%arg0: i32) -> (i32, i32) {
    %c0_i32 = arith.constant 0 : i32
    %c0_i32_0 = arith.constant 0 : i32
    %c0_i32_1 = arith.constant 0 : i32
    return %c0_i32, %c0_i32_0 : i32, i32
  }
  func.func @transform_4(%arg0: i32) -> (i32, i32) {
    %c0_i32 = arith.constant 0 : i32
    %c0_i32_0 = arith.constant 0 : i32
    %c0_i32_1 = arith.constant 0 : i32
    return %c0_i32, %c0_i32_0 : i32, i32
  }
  func.func @transform_5(%arg0: i32) -> (i32, i32) {
    %c0_i32 = arith.constant 0 : i32
    %c0_i32_0 = arith.constant 0 : i32
    %c0_i32_1 = arith.constant 0 : i32
    return %c0_i32, %c0_i32_0 : i32, i32
  }
  func.func @transform_6(%arg0: i32) -> (i32, i32) {
    %c0_i32 = arith.constant 0 : i32
    %c0_i32_0 = arith.constant 0 : i32
    %c0_i32_1 = arith.constant 0 : i32
    return %c0_i32, %c0_i32_0 : i32, i32
  }
  func.func @transform_7(%arg0: i32) -> (i32, i32) {
    %c0_i32 = arith.constant 0 : i32
    %c0_i32_0 = arith.constant 0 : i32
    return %arg0, %c0_i32 : i32, i32
  }
}

</mosaic_0001>

<llo_original>
// kernel: tpu_custom_call.1
$region0: #{tpu_custom_call.1}
  #allocation0 [shape = 'u32[]', space=smem, size = 0x4, offset = 0x4, fixed_abs, tag = 'smem constant byte address 0x4 - core index']
  #allocation1 [shape = 'u32[144,128]{1,0:T(1,128)}', space=vmem, size = 0x12000, scoped, tag = 'internal scratch']
  #allocation2 [shape = 'f32[1,1]{1,0:T(1,128)S(1)}', space=vmem, size = 0x200, scoped, tag = 'scoped memory for tpu_custom_call.1']
  %s0 = inlined_call_operand.vmem [shape: f32[8,32], index: 0, kind: input, shape index: {}]
  %s1 = inlined_call_operand.vmem [shape: bf16[32,64], index: 1, kind: input, shape index: {}]
  %s2 = inlined_call_operand.vmem [shape: f32[1,64], index: 2, kind: input, shape index: {}]
  %s3 = inlined_call_operand.vmem [shape: bf16[64,32], index: 3, kind: input, shape index: {}]
  %s4 = inlined_call_operand.vmem [shape: f32[1,32], index: 4, kind: input, shape index: {}]
  %s5 = inlined_call_operand.vmem [shape: bf16[32,1], index: 5, kind: input, shape index: {}]
  %s6 = inlined_call_operand.<no memory space> [shape: f32[1,1], index: 6, kind: input, shape index: {}]
  %s7 = inlined_call_operand.vmem [shape: f32[8,1], index: 7, kind: output, shape index: {}]
  %s8 = sld [smem:[#allocation0]]
  $region38: #{tpu_custom_call.1} parent=0
    _
  %s10 = ssub.s32 1, %s8
  %s11 = scalar_select 0, %s10, %s8
  %v12 = vstv %s6
  %13 = vst [vmem:[#allocation2] sm:$0x1] %v12
  // Predicated region
  $region2: #{tpu_custom_call.1} parent=0 // pred_check
    _
  $region3: #{tpu_custom_call.1} parent=0 // pred_check_branch
    %15 = sbr.rel (0) target = $region5
  $region4: #{tpu_custom_call.1} parent=0 // pred_region
    _
  $region5: #{tpu_custom_call.1} parent=0 // pred_fallthru
    _
  // Predicated region
  $region6: #{tpu_custom_call.1} parent=0 // pred_check
    _
  $region7: #{tpu_custom_call.1} parent=0 // pred_check_branch
    %17 = sbr.rel (0) target = $region9
  $region8: #{tpu_custom_call.1} parent=0 // pred_region
    _
  $region9: #{tpu_custom_call.1} parent=0 // pred_fallthru
    _
  // Predicated region
  $region10: #{tpu_custom_call.1} parent=0 // pred_check
    _
  $region11: #{tpu_custom_call.1} parent=0 // pred_check_branch
    %19 = sbr.rel (0) target = $region13
  $region12: #{tpu_custom_call.1} parent=0 // pred_region
    _
  $region13: #{tpu_custom_call.1} parent=0 // pred_fallthru
    _
  // Predicated region
  $region14: #{tpu_custom_call.1} parent=0 // pred_check
    _
  $region15: #{tpu_custom_call.1} parent=0 // pred_check_branch
    %21 = sbr.rel (0) target = $region17
  $region16: #{tpu_custom_call.1} parent=0 // pred_region
    _
  $region17: #{tpu_custom_call.1} parent=0 // pred_fallthru
    _
  // Predicated region
  $region18: #{tpu_custom_call.1} parent=0 // pred_check
    _
  $region19: #{tpu_custom_call.1} parent=0 // pred_check_branch
    %23 = sbr.rel (0) target = $region21
  $region20: #{tpu_custom_call.1} parent=0 // pred_region
    _
  $region21: #{tpu_custom_call.1} parent=0 // pred_fallthru
    _
  // Predicated region
  $region22: #{tpu_custom_call.1} parent=0 // pred_check
    _
  $region23: #{tpu_custom_call.1} parent=0 // pred_check_branch
    %25 = sbr.rel (0) target = $region25
  $region24: #{tpu_custom_call.1} parent=0 // pred_region
    _
  $region25: #{tpu_custom_call.1} parent=0 // pred_fallthru
    _
  // Predicated region
  $region26: #{tpu_custom_call.1} parent=0 // pred_check
    _
  $region27: #{tpu_custom_call.1} parent=0 // pred_check_branch
    %27 = sbr.rel (0) target = $region29
  $region28: #{tpu_custom_call.1} parent=0 // pred_region
    _
  $region29: #{tpu_custom_call.1} parent=0 // pred_fallthru
    _
  %v29 = vld [vmem:[%s0] sm:$0xff]
  %v30 = vld [vmem:[%s1] sm:$0xf]
  %v31 = vld [vmem:[%s1 + $0x4] sm:$0xf]
  %v32 = vld [vmem:[%s1 + $0x8] sm:$0xf]
  %v33 = vld [vmem:[%s1 + $0xc] sm:$0xf]
  %v34 = vld [vmem:[%s2] sm:$0x1]
  %v35 = vpack.c.bf16 %v29, %v29
  %v37 = vlaneseq
  %v38 = vshrl.u32 %v37, 7
  %v39 = vsub.s32 0, %v38
  %v40 = vrot.slane %v34, %v39
  %v46 = vunpack.c.l.b16 %v30
  %v47 = vunpack.c.l.b16 %v31
  %v48 = vunpack.c.l.b16 %v32
  %v49 = vunpack.c.l.b16 %v33
  %v50 = vpack.c.b16 %v47, %v46
  %v51 = vpack.c.b16 %v49, %v48
  %vm54 = vcmask 261120
  %v56 = vsel %vm54, %v35, 0
  %58 = vmatprep.subr.bf16.mxu0 0
  %59 = vmatpush1.bf16.msra.mxu0 %v50
  %60 = vmatprep.subr.bf16.mxu0 0
  %61 = vmatpush1.bf16.msra.mxu0 %v51
  %62 = vmatprep.subr.bf16.mxu0 0
  %63 = vmatpush1.bf16.msra.mxu0 0
  %64 = vmatprep.subr.bf16.mxu0 0
  %65 = vmatpush1.bf16.msra.mxu0 0
  %66 = vmatprep.subr.bf16.mxu0 0
  %67 = vmatpush1.bf16.msra.mxu0 0
  %68 = vmatprep.subr.bf16.mxu0 0
  %69 = vmatpush1.bf16.msra.mxu0 0
  %70 = vmatprep.subr.bf16.mxu0 0
  %71 = vmatpush1.bf16.msra.mxu0 0
  %72 = vmatprep.subr.bf16.mxu0 0
  %73 = vmatpush1.bf16.msra.mxu0 0
  %74 = vmatprep.subr.bf16.mxu0 0
  %75 = vmatpush1.bf16.msra.mxu0 0
  %76 = vmatprep.subr.bf16.mxu0 0
  %77 = vmatpush1.bf16.msra.mxu0 0
  %78 = vmatprep.subr.bf16.mxu0 0
  %79 = vmatpush1.bf16.msra.mxu0 0
  %80 = vmatprep.subr.bf16.mxu0 0
  %81 = vmatpush1.bf16.msra.mxu0 0
  %82 = vmatprep.subr.bf16.mxu0 0
  %83 = vmatpush1.bf16.msra.mxu0 0
  %84 = vmatprep.subr.bf16.mxu0 0
  %85 = vmatpush1.bf16.msra.mxu0 0
  %86 = vmatprep.subr.bf16.mxu0 0
  %87 = vmatpush1.bf16.msra.mxu0 0
  %88 = vmatprep.subr.bf16.mxu0 0
  %89 = vmatpush1.bf16.msra.mxu0 0
  %90 = vmatprep.mubr.bf16.mxu0 0
  %91 = vmatmul.mubr.bf16.gmra.mrb[0].mxu0 %v56
  %v92 = vpop.f32.mrb[0].mxu0
  %v93 = vadd.f32 %v40, %v92
  %v94 = vpop.f32.mrb[0].mxu0
  %v95 = vpop.f32.mrb[0].mxu0
  %v96 = vpop.f32.mrb[0].mxu0
  %97 = vdwg.mxu0
  %v98 = vmax.f32 %v93, 0.0
  %v99 = vld [vmem:[%s3] sm:$0xf]
  %v100 = vld [vmem:[%s3 + $0x4] sm:$0xf]
  %v101 = vld [vmem:[%s3 + $0x8] sm:$0xf]
  %v102 = vld [vmem:[%s3 + $0xc] sm:$0xf]
  %v103 = vld [vmem:[%s3 + $0x10] sm:$0xf]
  %v104 = vld [vmem:[%s3 + $0x14] sm:$0xf]
  %v105 = vld [vmem:[%s3 + $0x18] sm:$0xf]
  %v106 = vld [vmem:[%s3 + $0x1c] sm:$0xf]
  %v107 = vld [vmem:[%s4] sm:$0x1]
  %v108 = vpack.c.bf16 %v98, %v98
  %v110 = vlaneseq
  %v111 = vshrl.u32 %v110, 7
  %v112 = vsub.s32 0, %v111
  %v113 = vrot.slane %v107, %v112
  %v123 = vunpack.c.l.b16 %v99
  %v124 = vunpack.c.l.b16 %v100
  %v125 = vunpack.c.l.b16 %v101
  %v126 = vunpack.c.l.b16 %v102
  %v127 = vunpack.c.l.b16 %v103
  %v128 = vunpack.c.l.b16 %v104
  %v129 = vunpack.c.l.b16 %v105
  %v130 = vunpack.c.l.b16 %v106
  %v131 = vpack.c.b16 %v124, %v123
  %v132 = vpack.c.b16 %v126, %v125
  %v133 = vpack.c.b16 %v128, %v127
  %v134 = vpack.c.b16 %v130, %v129
  %vm139 = vcmask 523264
  %v141 = vsel %vm139, %v108, 0
  %143 = vmatprep.subr.bf16.mxu0 0
  %144 = vmatpush1.bf16.msra.mxu0 %v131
  %145 = vmatprep.subr.bf16.mxu0 0
  %146 = vmatpush1.bf16.msra.mxu0 %v132
  %147 = vmatprep.subr.bf16.mxu0 0
  %148 = vmatpush1.bf16.msra.mxu0 %v133
  %149 = vmatprep.subr.bf16.mxu0 0
  %150 = vmatpush1.bf16.msra.mxu0 %v134
  %151 = vmatprep.subr.bf16.mxu0 0
  %152 = vmatpush1.bf16.msra.mxu0 0
  %153 = vmatprep.subr.bf16.mxu0 0
  %154 = vmatpush1.bf16.msra.mxu0 0
  %155 = vmatprep.subr.bf16.mxu0 0
  %156 = vmatpush1.bf16.msra.mxu0 0
  %157 = vmatprep.subr.bf16.mxu0 0
  %158 = vmatpush1.bf16.msra.mxu0 0
  %159 = vmatprep.subr.bf16.mxu0 0
  %160 = vmatpush1.bf16.msra.mxu0 0
  %161 = vmatprep.subr.bf16.mxu0 0
  %162 = vmatpush1.bf16.msra.mxu0 0
  %163 = vmatprep.subr.bf16.mxu0 0
  %164 = vmatpush1.bf16.msra.mxu0 0
  %165 = vmatprep.subr.bf16.mxu0 0
  %166 = vmatpush1.bf16.msra.mxu0 0
  %167 = vmatprep.subr.bf16.mxu0 0
  %168 = vmatpush1.bf16.msra.mxu0 0
  %169 = vmatprep.subr.bf16.mxu0 0
  %170 = vmatpush1.bf16.msra.mxu0 0
  %171 = vmatprep.subr.bf16.mxu0 0
  %172 = vmatpush1.bf16.msra.mxu0 0
  %173 = vmatprep.subr.bf16.mxu0 0
  %174 = vmatpush1.bf16.msra.mxu0 0
  %175 = vmatprep.mubr.bf16.mxu0 0
  %176 = vmatmul.mubr.bf16.gmra.mrb[0].mxu0 %v141
  %v177 = vpop.f32.mrb[0].mxu0
  %v178 = vadd.f32 %v113, %v177
  %v179 = vpop.f32.mrb[0].mxu0
  %v180 = vpop.f32.mrb[0].mxu0
  %v181 = vpop.f32.mrb[0].mxu0
  %182 = vdwg.mxu0
  %v183 = vmax.f32 %v178, 0.0
  %v184 = vld [vmem:[%s5] sm:$0xf]
  %v185 = vld [vmem:[%s5 + $0x4] sm:$0xf]
  %v186 = vld [vmem:[%s5 + $0x8] sm:$0xf]
  %v187 = vld [vmem:[%s5 + $0xc] sm:$0xf]
  %v188 = vld [vmem:[#allocation2] sm:$0x1]
  %v189 = vpack.c.bf16 %v183, %v183
  %v191 = vlaneseq
  %v192 = vshrl.u32 %v191, 7
  %v193 = vsub.s32 0, %v192
  %v194 = vrot.slane %v188, %v193
  %v200 = vunpack.c.l.b16 %v184
  %v201 = vunpack.c.l.b16 %v185
  %v202 = vunpack.c.l.b16 %v186
  %v203 = vunpack.c.l.b16 %v187
  %v204 = vpack.c.b16 %v201, %v200
  %v205 = vpack.c.b16 %v203, %v202
  %v209 = vsel %vm54, %v189, 0
  %211 = vmatprep.subr.bf16.mxu0 0
  %212 = vmatpush1.bf16.msra.mxu0 %v204
  %213 = vmatprep.subr.bf16.mxu0 0
  %214 = vmatpush1.bf16.msra.mxu0 %v205
  %215 = vmatprep.subr.bf16.mxu0 0
  %216 = vmatpush1.bf16.msra.mxu0 0
  %217 = vmatprep.subr.bf16.mxu0 0
  %218 = vmatpush1.bf16.msra.mxu0 0
  %219 = vmatprep.subr.bf16.mxu0 0
  %220 = vmatpush1.bf16.msra.mxu0 0
  %221 = vmatprep.subr.bf16.mxu0 0
  %222 = vmatpush1.bf16.msra.mxu0 0
  %223 = vmatprep.subr.bf16.mxu0 0
  %224 = vmatpush1.bf16.msra.mxu0 0
  %225 = vmatprep.subr.bf16.mxu0 0
  %226 = vmatpush1.bf16.msra.mxu0 0
  %227 = vmatprep.subr.bf16.mxu0 0
  %228 = vmatpush1.bf16.msra.mxu0 0
  %229 = vmatprep.subr.bf16.mxu0 0
  %230 = vmatpush1.bf16.msra.mxu0 0
  %231 = vmatprep.subr.bf16.mxu0 0
  %232 = vmatpush1.bf16.msra.mxu0 0
  %233 = vmatprep.subr.bf16.mxu0 0
  %234 = vmatpush1.bf16.msra.mxu0 0
  %235 = vmatprep.subr.bf16.mxu0 0
  %236 = vmatpush1.bf16.msra.mxu0 0
  %237 = vmatprep.subr.bf16.mxu0 0
  %238 = vmatpush1.bf16.msra.mxu0 0
  %239 = vmatprep.subr.bf16.mxu0 0
  %240 = vmatpush1.bf16.msra.mxu0 0
  %241 = vmatprep.subr.bf16.mxu0 0
  %242 = vmatpush1.bf16.msra.mxu0 0
  %243 = vmatprep.mubr.bf16.mxu0 0
  %244 = vmatmul.mubr.bf16.gmra.mrb[0].mxu0 %v209
  %v245 = vpop.f32.mrb[0].mxu0
  %v246 = vadd.f32 %v194, %v245
  %v247 = vpop.f32.mrb[0].mxu0
  %v248 = vpop.f32.mrb[0].mxu0
  %v249 = vpop.f32.mrb[0].mxu0
  %250 = vdwg.mxu0
  %vm251 = vcmask 7168
  %252 = vst.msk [vmem:[%s7] sm:$0xff] %vm251, %v246
  // Predicated region
  $region30: #{tpu_custom_call.1} parent=0 // pred_check
    _
  $region31: #{tpu_custom_call.1} parent=0 // pred_check_branch
    %254 = sbr.rel (0) target = $region33
  $region32: #{tpu_custom_call.1} parent=0 // pred_region
    _
  $region33: #{tpu_custom_call.1} parent=0 // pred_fallthru
    _
  // Predicated region
  $region34: #{tpu_custom_call.1} parent=0 // pred_check
    _
  $region35: #{tpu_custom_call.1} parent=0 // pred_check_branch
    %256 = sbr.rel (0) target = $region37
  $region36: #{tpu_custom_call.1} parent=0 // pred_region
    _
  $region37: #{tpu_custom_call.1} parent=0 // pred_fallthru
    _

</llo_original>
